<compile_context>
chip_gen: v7x
topology: tpu7x:2x2x1
jax: 0.10.0
libtpu: 0.0.40
codegen_flags: <defaults>
</compile_context>

<pallas_src>
import functools

import jax
import jax.numpy as jnp
from jax.experimental import pallas as pl
from jax.experimental.pallas import tpu as pltpu


def _round_up(x, m):
    return (x + m - 1) // m * m


# ---------------------------------------------------------------------------
# VMEM capacity query (cached).  Falls back to the smallest per-core VMEM of
# any supported generation (v7x: 64 MiB) so a failed query is merely
# conservative, never unsafe.
# ---------------------------------------------------------------------------
_VMEM_BYTES = None


def _get_vmem_bytes():
    global _VMEM_BYTES
    if _VMEM_BYTES is None:
        try:
            _VMEM_BYTES = int(pltpu.get_tpu_info().vmem_capacity_bytes)
        except Exception:
            _VMEM_BYTES = 64 * 1024 * 1024
    return _VMEM_BYTES


def _vmem_footprint(tm, th, c_p, cbytes, obytes):
    """Estimated VMEM bytes for one tile config (double-buffered BlockSpecs)."""
    x_t = 2 * tm * c_p * cbytes          # x row tile
    w1_t = 2 * c_p * th * cbytes         # W1 column slice
    w2_t = 2 * th * c_p * cbytes         # W2 row slice
    b_t = 2 * (th + c_p) * 4             # bias slices (f32)
    out_t = 2 * tm * c_p * obytes        # output tile
    acc = tm * c_p * 4                   # f32 accumulator scratch
    h = tm * th * 4                      # ReLU intermediate
    return x_t + w1_t + w2_t + b_t + out_t + acc + h


def _select_tiles(m, c_p, h_p, cbytes, obytes, vmem_bytes):
    """Pick (tm, th): biggest row tile first (arithmetic-intensity lever),
    biggest hidden slice second, constrained to ~70% of VMEM."""
    budget = int(vmem_bytes * 0.70)

    # th must divide the 128-rounded H exactly (no over-padding).
    k = h_p // 128
    th_cands = sorted(
        {d * 128 for d in range(1, k + 1) if k % d == 0 and d * 128 <= 2048},
        reverse=True,
    )

    tm_cap = _round_up(min(m, 1024), 16)  # shrink for tiny inputs
    tm_cands = sorted(
        {t for t in (1024, 512, 256, 128) if t <= tm_cap} | {tm_cap},
        reverse=True,
    )

    for tm in tm_cands:
        for th in th_cands:
            if _vmem_footprint(tm, th, c_p, cbytes, obytes) <= budget:
                return tm, th
    return tm_cands[-1], th_cands[-1]


# ---------------------------------------------------------------------------
# Kernel
# ---------------------------------------------------------------------------
def _ffn_kernel(x_ref, w1_ref, b1_ref, w2_ref, b2_ref, o_ref, acc_ref):
    # Grid: (M_p // tm, H_p // th).  Axis 1 (hidden dim) is the reduction
    # axis; acc_ref is a (tm, C_p) f32 accumulator resident across it.
    #   x_ref:  (tm, C_p)   row tile
    #   w1_ref: (C_p, th)   column slice of W1
    #   b1_ref: (1, th)     matching slice of b1
    #   w2_ref: (th, C_p)   row slice of W2
    #   b2_ref: (1, C_p)
    #   o_ref:  (tm, C_p)
    j = pl.program_id(1)

    @pl.when(j == 0)
    def _():
        # Fold b2 into the accumulator init: saves a full-tile add at finalize.
        acc_ref[...] = jnp.broadcast_to(b2_ref[...], acc_ref.shape)

    # First matmul for this hidden slice, f32 accumulation on the MXU.
    h = jnp.dot(x_ref[...], w1_ref[...], preferred_element_type=jnp.float32)
    # Bias + ReLU are elementwise in H, so per-slice application is exact.
    h = jnp.maximum(h + b1_ref[...], 0.0)

    # Partial second matmul, accumulated in f32.
    acc_ref[...] += jnp.dot(h.astype(w2_ref.dtype), w2_ref[...],
                            preferred_element_type=jnp.float32)

    @pl.when(j == pl.num_programs(1) - 1)
    def _():
        # Dropout (eval mode) == identity.
        o_ref[...] = acc_ref[...].astype(o_ref.dtype)


# ---------------------------------------------------------------------------
# Parameter preparation (run ONCE, outside the hot path): cast to the compute
# dtype and pad to lane-dense multiples of 128.
# ---------------------------------------------------------------------------
def prepare_params(w1, b1, w2, b2, *, compute_dtype=jnp.bfloat16):
    C, H = w1.shape
    C_p = _round_up(C, 128)
    H_p = _round_up(H, 128)

    w1 = w1.astype(compute_dtype)
    w2 = w2.astype(compute_dtype)
    b1 = b1.astype(jnp.float32).reshape(1, H)
    b2 = b2.astype(jnp.float32).reshape(1, C)

    if C_p != C or H_p != H:
        w1 = jnp.pad(w1, ((0, C_p - C), (0, H_p - H)))
        w2 = jnp.pad(w2, ((0, H_p - H), (0, C_p - C)))
    if H_p != H:
        b1 = jnp.pad(b1, ((0, 0), (0, H_p - H)))
    if C_p != C:
        b2 = jnp.pad(b2, ((0, 0), (0, C_p - C)))
    return (w1, b1, w2, b2)


# ---------------------------------------------------------------------------
# Forward pass (hot path): only x is padded / cast per call.
# ---------------------------------------------------------------------------
@jax.jit
def feed_forward(x, params):
    """Fused Linear -> ReLU -> Linear -> Dropout(eval).  x: (B, T, C) -> (B, T, C)."""
    w1p, b1p, w2p, b2p = params
    B, T, C = x.shape
    C_p, H_p = w1p.shape
    M = B * T
    out_dtype = x.dtype
    compute_dtype = w1p.dtype

    cbytes = jnp.dtype(compute_dtype).itemsize
    obytes = jnp.dtype(out_dtype).itemsize

    vmem_bytes = _get_vmem_bytes()
    tm, th = _select_tiles(M, C_p, H_p, cbytes, obytes, vmem_bytes)
    M_p = _round_up(M, tm)

    # Scoped-VMEM limit: computed need + headroom, capped below physical so
    # compiler-internal scratch/semaphores always fit (critical on v7x 64 MiB).
    need = _vmem_footprint(tm, th, C_p, cbytes, obytes)
    vmem_limit = int(min(vmem_bytes * 0.85, max(need + (8 << 20), 32 << 20)))

    x2d = x.reshape(M, C).astype(compute_dtype)
    if M_p != M or C_p != C:
        x2d = jnp.pad(x2d, ((0, M_p - M), (0, C_p - C)))

    grid = (M_p // tm, H_p // th)
    n_m = grid[0]

    cost = pl.CostEstimate(
        flops=4 * M_p * H_p * C_p,
        transcendentals=0,
        bytes_accessed=(
            M_p * C_p * cbytes                           # x (streamed once)
            + n_m * 2 * C_p * H_p * cbytes               # W1/W2 per row tile
            + 2 * (H_p + C_p) * 4                        # biases
            + M_p * C_p * obytes                         # output
        ),
    )

    out2d = pl.pallas_call(
        _ffn_kernel,
        out_shape=jax.ShapeDtypeStruct((M_p, C_p), out_dtype),
        grid_spec=pltpu.PrefetchScalarGridSpec(
            num_scalar_prefetch=0,
            grid=grid,
            in_specs=[
                pl.BlockSpec((tm, C_p), lambda i, j: (i, 0)),   # x row tile
                pl.BlockSpec((C_p, th), lambda i, j: (0, j)),   # W1 col slice
                pl.BlockSpec((1, th),   lambda i, j: (0, j)),   # b1 slice
                pl.BlockSpec((th, C_p), lambda i, j: (j, 0)),   # W2 row slice
                pl.BlockSpec((1, C_p),  lambda i, j: (0, 0)),   # b2
            ],
            out_specs=pl.BlockSpec((tm, C_p), lambda i, j: (i, 0)),
            scratch_shapes=[pltpu.VMEM((tm, C_p), jnp.float32)],
        ),
        compiler_params=pltpu.CompilerParams(
            # M axis shards across TensorCores; H axis is the reduction and
            # must stay sequential.
            dimension_semantics=("parallel", "arbitrary"),
            vmem_limit_bytes=vmem_limit,
        ),
        cost_estimate=cost,
    )(x2d, w1p, b1p, w2p, b2p)

    return out2d[:M, :C].reshape(B, T, C)


def init_params(key, n_embd, dtype=jnp.float32):
    """Deterministic init mimicking nn.Linear's U(-1/sqrt(fan_in), 1/sqrt(fan_in))."""
    hidden = 4 * n_embd
    k1, k2, k3, k4 = jax.random.split(key, 4)
    bound1 = 1.0 / jnp.sqrt(n_embd)
    bound2 = 1.0 / jnp.sqrt(hidden)
    w1 = jax.random.uniform(k1, (n_embd, hidden), dtype, -bound1, bound1)
    b1 = jax.random.uniform(k2, (hidden,), dtype, -bound1, bound1)
    w2 = jax.random.uniform(k3, (hidden, n_embd), dtype, -bound2, bound2)
    b2 = jax.random.uniform(k4, (n_embd,), dtype, -bound2, bound2)
    return w1, b1, w2, b2


if __name__ == "__main__":
    def ref_ffn(x, w1, b1, w2, b2):
        return jnp.maximum(x @ w1 + b1, 0.0) @ w2 + b2

    # --- Small shape matching the module's toy config (f32 opt-in, exact) --
    key = jax.random.PRNGKey(0)
    B, T, n_embd = 2, 8, 32
    k_x, k_p = jax.random.split(key)
    x = jax.random.normal(k_x, (B, T, n_embd), jnp.float32)
    w1, b1, w2, b2 = init_params(k_p, n_embd)

    params_f32 = prepare_params(w1, b1, w2, b2, compute_dtype=jnp.float32)
    out = jax.block_until_ready(feed_forward(x, params_f32))
    ref = ref_ffn(x, w1, b1, w2, b2)
    assert out.shape == (B, T, n_embd)
    assert jnp.allclose(out, ref, atol=1e-5, rtol=1e-5)

    # --- Larger shape exercising both grid axes, default bf16 compute ------
    B2, T2, C2 = 2, 256, 256
    k_x2, k_p2 = jax.random.split(jax.random.PRNGKey(1))
    x2 = jax.random.normal(k_x2, (B2, T2, C2), jnp.float32)
    p2 = init_params(k_p2, C2)

    params_bf16 = prepare_params(*p2)          # bf16 compute, padded once
    out2 = jax.block_until_ready(feed_forward(x2, params_bf16))
    ref2 = ref_ffn(x2, *p2)
    assert jnp.allclose(out2, ref2, atol=5e-2, rtol=5e-2)

    # Exact f32 path on the same larger shape (tighter tolerance).
    params2_f32 = prepare_params(*p2, compute_dtype=jnp.float32)
    out3 = jax.block_until_ready(feed_forward(x2, params2_f32))
    assert jnp.allclose(out3, ref2, atol=2e-3, rtol=2e-3)

    print("KERNEL_OK")
</pallas_src>

<mosaic_0001>
module attributes {stable_mosaic.version = 11 : i64} {
  func.func @_ffn_kernel(%arg0: i32, %arg1: i32, %arg2: memref<16x128xf32, #tpu.memory_space<vmem>>, %arg3: memref<128x128xf32, #tpu.memory_space<vmem>>, %arg4: memref<1x128xf32, #tpu.memory_space<vmem>>, %arg5: memref<128x128xf32, #tpu.memory_space<vmem>>, %arg6: memref<1x128xf32, #tpu.memory_space<vmem>>, %arg7: memref<16x128xf32, #tpu.memory_space<vmem>>, %arg8: memref<16x128xf32, #tpu.memory_space<vmem>>) attributes {dimension_semantics = [#tpu.dimension_semantics<parallel>, #tpu.dimension_semantics<arbitrary>], iteration_bounds = array<i64: 1, 1>, scalar_prefetch = 0 : i64, scratch_operands = 1 : i64, tpu.core_type = #tpu.core_type<tc>, window_params = [{transform_indices = @transform_0, window_bounds = array<i64: 16, 128>}, {transform_indices = @transform_1, window_bounds = array<i64: 128, 128>}, {transform_indices = @transform_2, window_bounds = array<i64: 1, 128>}, {transform_indices = @transform_3, window_bounds = array<i64: 128, 128>}, {pipeline_mode = #tpu.pipeline_mode<synchronous>, transform_indices = @transform_4, window_bounds = array<i64: 1, 128>}, {transform_indices = @transform_5, window_bounds = array<i64: 16, 128>}]} {
    %c0_i32 = arith.constant 0 : i32
    %0 = arith.cmpi eq, %arg1, %c0_i32 : i32
    %1 = arith.extui %0 : i1 to i32
    %c0_i32_0 = arith.constant 0 : i32
    %2 = arith.cmpi ne, %1, %c0_i32_0 : i32
    scf.if %2 {
      %c0_16 = arith.constant 0 : index
      %c0_17 = arith.constant 0 : index
      %19 = vector.load %arg6[%c0_16, %c0_17] : memref<1x128xf32, #tpu.memory_space<vmem>>, vector<1x128xf32>
      %20 = vector.shape_cast %19 : vector<1x128xf32> to vector<1x128xf32>
      %21 = vector.broadcast %20 : vector<1x128xf32> to vector<16x128xf32>
      %c0_18 = arith.constant 0 : index
      %c0_19 = arith.constant 0 : index
      %22 = vector.load %arg8[%c0_18, %c0_19] : memref<16x128xf32, #tpu.memory_space<vmem>>, vector<16x128xf32>
      tpu.vector_store %arg8[%c0_18, %c0_19], %21 {strides = array<i32>} : memref<16x128xf32, #tpu.memory_space<vmem>>, vector<16x128xf32>,
    } else {
    }
    %c0 = arith.constant 0 : index
    %c0_1 = arith.constant 0 : index
    %3 = vector.load %arg2[%c0, %c0_1] : memref<16x128xf32, #tpu.memory_space<vmem>>, vector<16x128xf32>
    %c0_2 = arith.constant 0 : index
    %c0_3 = arith.constant 0 : index
    %4 = vector.load %arg3[%c0_2, %c0_3] : memref<128x128xf32, #tpu.memory_space<vmem>>, vector<128x128xf32>
    %cst = arith.constant dense<0.000000e+00> : vector<16x128xf32>
    %5 = tpu.matmul %3, %4, %cst {dimension_numbers = #tpu.dot_dimension_numbers<[1], [0], [0], [1], [0, 0, 1, 1], [], []>} : vector<16x128xf32>, vector<128x128xf32>, vector<16x128xf32> -> vector<16x128xf32>
    %c0_4 = arith.constant 0 : index
    %c0_5 = arith.constant 0 : index
    %6 = vector.load %arg4[%c0_4, %c0_5] : memref<1x128xf32, #tpu.memory_space<vmem>>, vector<1x128xf32>
    %7 = vector.broadcast %6 : vector<1x128xf32> to vector<16x128xf32>
    %8 = arith.addf %5, %7 : vector<16x128xf32>
    %cst_6 = arith.constant 0.000000e+00 : f32
    %9 = vector.broadcast %cst_6 : f32 to vector<16x128xf32>
    %10 = arith.maximumf %8, %9 : vector<16x128xf32>
    %c0_7 = arith.constant 0 : index
    %c0_8 = arith.constant 0 : index
    %11 = vector.load %arg8[%c0_7, %c0_8] : memref<16x128xf32, #tpu.memory_space<vmem>>, vector<16x128xf32>
    %c0_9 = arith.constant 0 : index
    %c0_10 = arith.constant 0 : index
    %12 = vector.load %arg5[%c0_9, %c0_10] : memref<128x128xf32, #tpu.memory_space<vmem>>, vector<128x128xf32>
    %cst_11 = arith.constant dense<0.000000e+00> : vector<16x128xf32>
    %13 = tpu.matmul %10, %12, %cst_11 {dimension_numbers = #tpu.dot_dimension_numbers<[1], [0], [0], [1], [0, 0, 1, 1], [], []>} : vector<16x128xf32>, vector<128x128xf32>, vector<16x128xf32> -> vector<16x128xf32>
    %14 = arith.addf %11, %13 : vector<16x128xf32>
    %c0_12 = arith.constant 0 : index
    %c0_13 = arith.constant 0 : index
    %15 = vector.load %arg8[%c0_12, %c0_13] : memref<16x128xf32, #tpu.memory_space<vmem>>, vector<16x128xf32>
    tpu.vector_store %arg8[%c0_12, %c0_13], %14 {strides = array<i32>} : memref<16x128xf32, #tpu.memory_space<vmem>>, vector<16x128xf32>,
    %c0_i32_14 = arith.constant 0 : i32
    %16 = arith.cmpi eq, %arg1, %c0_i32_14 : i32
    %17 = arith.extui %16 : i1 to i32
    %c0_i32_15 = arith.constant 0 : i32
    %18 = arith.cmpi ne, %17, %c0_i32_15 : i32
    scf.if %18 {
      %c0_16 = arith.constant 0 : index
      %c0_17 = arith.constant 0 : index
      %19 = vector.load %arg8[%c0_16, %c0_17] : memref<16x128xf32, #tpu.memory_space<vmem>>, vector<16x128xf32>
      %c0_18 = arith.constant 0 : index
      %c0_19 = arith.constant 0 : index
      %20 = vector.load %arg7[%c0_18, %c0_19] : memref<16x128xf32, #tpu.memory_space<vmem>>, vector<16x128xf32>
      tpu.vector_store %arg7[%c0_18, %c0_19], %19 {strides = array<i32>} : memref<16x128xf32, #tpu.memory_space<vmem>>, vector<16x128xf32>,
    } else {
    }
    return
  }
  func.func @transform_0(%arg0: i32, %arg1: i32) -> (i32, i32) {
    %c0_i32 = arith.constant 0 : i32
    %c0_i32_0 = arith.constant 0 : i32
    return %arg0, %c0_i32 : i32, i32
  }
  func.func @transform_1(%arg0: i32, %arg1: i32) -> (i32, i32) {
    %c0_i32 = arith.constant 0 : i32
    %c0_i32_0 = arith.constant 0 : i32
    return %c0_i32, %arg1 : i32, i32
  }
  func.func @transform_2(%arg0: i32, %arg1: i32) -> (i32, i32) {
    %c0_i32 = arith.constant 0 : i32
    %c0_i32_0 = arith.constant 0 : i32
    return %c0_i32, %arg1 : i32, i32
  }
  func.func @transform_3(%arg0: i32, %arg1: i32) -> (i32, i32) {
    %c0_i32 = arith.constant 0 : i32
    %c0_i32_0 = arith.constant 0 : i32
    return %arg1, %c0_i32 : i32, i32
  }
  func.func @transform_4(%arg0: i32, %arg1: i32) -> (i32, i32) {
    %c0_i32 = arith.constant 0 : i32
    %c0_i32_0 = arith.constant 0 : i32
    %c0_i32_1 = arith.constant 0 : i32
    return %c0_i32, %c0_i32_0 : i32, i32
  }
  func.func @transform_5(%arg0: i32, %arg1: i32) -> (i32, i32) {
    %c0_i32 = arith.constant 0 : i32
    %c0_i32_0 = arith.constant 0 : i32
    return %arg0, %c0_i32 : i32, i32
  }
}

</mosaic_0001>

<llo_original>
// kernel: feed_forward.1
$region0: #{feed_forward.1}
  #allocation0 [shape = 'u32[]', space=smem, size = 0x4, offset = 0x4, fixed_abs, tag = 'smem constant byte address 0x4 - core index']
  #allocation1 [shape = 'u32[144,128]{1,0:T(1,128)}', space=vmem, size = 0x12000, scoped, tag = 'internal scratch']
  #allocation2 [shape = 'f32[16,128]{1,0:T(8,128)}', space=vmem, size = 0x2000, scoped, tag = 'scratch operand']
  %s0 = inlined_call_operand.vmem [shape: f32[16,128], index: 0, kind: input, shape index: {}]
  %s1 = inlined_call_operand.hbm [shape: f32[128,128], index: 1, kind: input, shape index: {}]
  %s2 = inlined_call_operand.vmem [shape: f32[1,128], index: 2, kind: input, shape index: {}]
  %s3 = inlined_call_operand.hbm [shape: f32[128,128], index: 3, kind: input, shape index: {}]
  %s4 = inlined_call_operand.vmem [shape: f32[1,128], index: 4, kind: input, shape index: {}]
  %s5 = inlined_call_operand.vmem [shape: f32[16,128], index: 5, kind: output, shape index: {}]
  %s6 = sld [smem:[#allocation0]]
  $region46: #{feed_forward.1} parent=0
    _
  %s8 = ssub.s32 1, %s6
  %s9 = scalar_select 0, %s8, %s6
  $region1: #{feed_forward.1} parent=0
    #allocation3 [shape = 'u8[65536]{0}', space=vmem, size = 0x10000, scoped, tag = 'input window, operand 1, single buffered']
    #allocation4 [shape = 's32[1]{0}', space=sflag, size = 0x4, scoped, tag = 'scoped memory for feed_forward.1']
    #allocation5 [shape = 'u8[65536]{0}', space=vmem, size = 0x10000, scoped, tag = 'input window, operand 3, single buffered']
    #allocation6 [shape = 's32[1]{0}', space=sflag, size = 0x4, scoped, tag = 'scoped memory for feed_forward.1']
    %10 = vsyncpa [#allocation4], 0
    %11 = vsyncpa [#allocation6], 0
    // Predicated region
    $region2: #{feed_forward.1} parent=1 // pred_check
      _
    $region3: #{feed_forward.1} parent=1 // pred_check_branch
      %13 = sbr.rel (0) target = $region5
    $region4: #{feed_forward.1} parent=1 // pred_region
      _
    $region5: #{feed_forward.1} parent=1 // pred_fallthru
      _
    // Predicated region
    $region6: #{feed_forward.1} parent=1 // pred_check
      _
    $region7: #{feed_forward.1} parent=1 // pred_check_branch
      %15 = sbr.rel (0) target = $region9
    $region8: #{feed_forward.1} parent=1 // pred_region
      %s17 = ssub.s32 2048, 2048
      %18 = vsyncadd [#allocation4], %s17
      %s19 = sshll.u32 [#allocation3], 4
      %s20 = int_to_ptr.vmem [resolvable:$true] %s19
      %25 = dma.hbm_to_vmem [thread:$0]  %s1, 2048, %s20, [#allocation4], 128, 128, 8
    $region9: #{feed_forward.1} parent=1 // pred_fallthru
      _
    // Predicated region
    $region10: #{feed_forward.1} parent=1 // pred_check
      _
    $region11: #{feed_forward.1} parent=1 // pred_check_branch
      %27 = sbr.rel (0) target = $region13
    $region12: #{feed_forward.1} parent=1 // pred_region
      _
    $region13: #{feed_forward.1} parent=1 // pred_fallthru
      _
    // Predicated region
    $region14: #{feed_forward.1} parent=1 // pred_check
      _
    $region15: #{feed_forward.1} parent=1 // pred_check_branch
      %29 = sbr.rel (0) target = $region17
    $region16: #{feed_forward.1} parent=1 // pred_region
      %s31 = ssub.s32 2048, 2048
      %32 = vsyncadd [#allocation6], %s31
      %s33 = sshll.u32 [#allocation5], 4
      %s34 = int_to_ptr.vmem [resolvable:$true] %s33
      %39 = dma.hbm_to_vmem [thread:$0]  %s3, 2048, %s34, [#allocation6], 128, 128, 8
    $region17: #{feed_forward.1} parent=1 // pred_fallthru
      _
    // Predicated region
    $region18: #{feed_forward.1} parent=1 // pred_check
      _
    $region19: #{feed_forward.1} parent=1 // pred_check_branch
      %41 = sbr.rel (0) target = $region21
    $region20: #{feed_forward.1} parent=1 // pred_region
      _
    $region21: #{feed_forward.1} parent=1 // pred_fallthru
      _
    // Predicated region
    $region22: #{feed_forward.1} parent=1 // pred_check
      _
    $region23: #{feed_forward.1} parent=1 // pred_check_branch
      %43 = sbr.rel (0) target = $region25
    $region24: #{feed_forward.1} parent=1 // pred_region
      %44 = dma.done [#allocation4], 2048
    $region25: #{feed_forward.1} parent=1 // pred_fallthru
      _
    // Predicated region
    $region26: #{feed_forward.1} parent=1 // pred_check
      _
    $region27: #{feed_forward.1} parent=1 // pred_check_branch
      %46 = sbr.rel (0) target = $region29
    $region28: #{feed_forward.1} parent=1 // pred_region
      %47 = dma.done [#allocation6], 2048
    $region29: #{feed_forward.1} parent=1 // pred_fallthru
      _
    %p48 = scmp.eq.s32.totalorder 0, 0
    // Predicated region
    $region30: #{feed_forward.1} parent=1 // pred_check
      %p49 = pneg %p48
    $region31: #{feed_forward.1} parent=1 // pred_check_branch
      %51 = sbr.rel (%p49) target = $region33
    $region32: #{feed_forward.1} parent=1 // pred_region
      %v52 = vld [vmem:[%s4] sm:$0x1]
      %v54 = vlaneseq
      %v55 = vshrl.u32 %v54, 7
      %v56 = vsub.s32 0, %v55
      %v57 = vrot.slane %v52, %v56
      %59 = vst [vmem:[#allocation2] sm:$0xff] %v57
      %60 = vst [vmem:[#allocation2 + $0x8] sm:$0xff] %v57
    $region33: #{feed_forward.1} parent=1 // pred_fallthru
      _
    %v61 = vld [vmem:[%s0] sm:$0xff]
    %v62 = vld [vmem:[%s0 + $0x8] sm:$0xff]
    %v63 = vld [vmem:[#allocation3] sm:$0xff]
    %v64 = vld [vmem:[#allocation3 + $0x8] sm:$0xff]
    %v65 = vld [vmem:[#allocation3 + $0x10] sm:$0xff]
    %v66 = vld [vmem:[#allocation3 + $0x18] sm:$0xff]
    %v67 = vld [vmem:[#allocation3 + $0x20] sm:$0xff]
    %v68 = vld [vmem:[#allocation3 + $0x28] sm:$0xff]
    %v69 = vld [vmem:[#allocation3 + $0x30] sm:$0xff]
    %v70 = vld [vmem:[#allocation3 + $0x38] sm:$0xff]
    %v71 = vld [vmem:[#allocation3 + $0x40] sm:$0xff]
    %v72 = vld [vmem:[#allocation3 + $0x48] sm:$0xff]
    %v73 = vld [vmem:[#allocation3 + $0x50] sm:$0xff]
    %v74 = vld [vmem:[#allocation3 + $0x58] sm:$0xff]
    %v75 = vld [vmem:[#allocation3 + $0x60] sm:$0xff]
    %v76 = vld [vmem:[#allocation3 + $0x68] sm:$0xff]
    %v77 = vld [vmem:[#allocation3 + $0x70] sm:$0xff]
    %v78 = vld [vmem:[#allocation3 + $0x78] sm:$0xff]
    %v79 = vld [vmem:[%s2] sm:$0x1]
    %v81 = vlaneseq
    %v82 = vshrl.u32 %v81, 7
    %v83 = vsub.s32 0, %v82
    %v84 = vrot.slane %v79, %v83
    %86 = vmatprep.subr.mxu0 0.0
    %87 = vmatpush1.msra.mxu0 %v63
    %88 = vmatprep.subr.mxu0 0.0
    %89 = vmatpush1.msra.mxu0 %v64
    %90 = vmatprep.subr.mxu0 0.0
    %91 = vmatpush1.msra.mxu0 %v65
    %92 = vmatprep.subr.mxu0 0.0
    %93 = vmatpush1.msra.mxu0 %v66
    %94 = vmatprep.subr.mxu0 0.0
    %95 = vmatpush1.msra.mxu0 %v67
    %96 = vmatprep.subr.mxu0 0.0
    %97 = vmatpush1.msra.mxu0 %v68
    %98 = vmatprep.subr.mxu0 0.0
    %99 = vmatpush1.msra.mxu0 %v69
    %100 = vmatprep.subr.mxu0 0.0
    %101 = vmatpush1.msra.mxu0 %v70
    %102 = vmatprep.subr.mxu0 0.0
    %103 = vmatpush1.msra.mxu0 %v71
    %104 = vmatprep.subr.mxu0 0.0
    %105 = vmatpush1.msra.mxu0 %v72
    %106 = vmatprep.subr.mxu0 0.0
    %107 = vmatpush1.msra.mxu0 %v73
    %108 = vmatprep.subr.mxu0 0.0
    %109 = vmatpush1.msra.mxu0 %v74
    %110 = vmatprep.subr.mxu0 0.0
    %111 = vmatpush1.msra.mxu0 %v75
    %112 = vmatprep.subr.mxu0 0.0
    %113 = vmatpush1.msra.mxu0 %v76
    %114 = vmatprep.subr.mxu0 0.0
    %115 = vmatpush1.msra.mxu0 %v77
    %116 = vmatprep.subr.mxu0 0.0
    %117 = vmatpush1.msra.mxu0 %v78
    %118 = vmatprep.subr.mxu0 0.0
    %119 = vmatpush1.msra.mxu0 0.0
    %120 = vmatprep.subr.mxu0 0.0
    %121 = vmatpush1.msra.mxu0 0.0
    %122 = vmatprep.subr.mxu0 0.0
    %123 = vmatpush1.msra.mxu0 0.0
    %124 = vmatprep.subr.mxu0 0.0
    %125 = vmatpush1.msra.mxu0 0.0
    %126 = vmatprep.subr.mxu0 0.0
    %127 = vmatpush1.msra.mxu0 0.0
    %128 = vmatprep.subr.mxu0 0.0
    %129 = vmatpush1.msra.mxu0 0.0
    %130 = vmatprep.subr.mxu0 0.0
    %131 = vmatpush1.msra.mxu0 0.0
    %132 = vmatprep.subr.mxu0 0.0
    %133 = vmatpush1.msra.mxu0 0.0
    %134 = vmatprep.subr.mxu0 0.0
    %135 = vmatpush1.msra.mxu0 0.0
    %136 = vmatprep.subr.mxu0 0.0
    %137 = vmatpush1.msra.mxu0 0.0
    %138 = vmatprep.subr.mxu0 0.0
    %139 = vmatpush1.msra.mxu0 0.0
    %140 = vmatprep.subr.mxu0 0.0
    %141 = vmatpush1.msra.mxu0 0.0
    %142 = vmatprep.subr.mxu0 0.0
    %143 = vmatpush1.msra.mxu0 0.0
    %144 = vmatprep.subr.mxu0 0.0
    %145 = vmatpush1.msra.mxu0 0.0
    %146 = vmatprep.subr.mxu0 0.0
    %147 = vmatpush1.msra.mxu0 0.0
    %148 = vmatprep.subr.mxu0 0.0
    %149 = vmatpush1.msra.mxu0 0.0
    %150 = vmatprep.mubr.f32.mxu0 0.0
    %151 = vmatmul.mubr.f32.gmra.mrb[0].mxu0 %v61
    %v152 = vpop.f32.mrb[0].mxu0
    %v153 = vadd.f32 %v84, %v152
    %v154 = vpop.f32.mrb[0].mxu0
    %155 = vmatprep.mubr.f32.mxu0 0.0
    %156 = vmatmul.mubr.f32.gmra.mrb[0].mxu0 %v62
    %v157 = vpop.f32.mrb[0].mxu0
    %v158 = vadd.f32 %v84, %v157
    %v159 = vpop.f32.mrb[0].mxu0
    %160 = vdwg.mxu0
    %v161 = vmax.f32 %v153, 0.0
    %v162 = vmax.f32 %v158, 0.0
    %v163 = vld [vmem:[#allocation2] sm:$0xff]
    %v164 = vld [vmem:[#allocation2 + $0x8] sm:$0xff]
    %v165 = vld [vmem:[#allocation5] sm:$0xff]
    %v166 = vld [vmem:[#allocation5 + $0x8] sm:$0xff]
    %v167 = vld [vmem:[#allocation5 + $0x10] sm:$0xff]
    %v168 = vld [vmem:[#allocation5 + $0x18] sm:$0xff]
    %v169 = vld [vmem:[#allocation5 + $0x20] sm:$0xff]
    %v170 = vld [vmem:[#allocation5 + $0x28] sm:$0xff]
    %v171 = vld [vmem:[#allocation5 + $0x30] sm:$0xff]
    %v172 = vld [vmem:[#allocation5 + $0x38] sm:$0xff]
    %v173 = vld [vmem:[#allocation5 + $0x40] sm:$0xff]
    %v174 = vld [vmem:[#allocation5 + $0x48] sm:$0xff]
    %v175 = vld [vmem:[#allocation5 + $0x50] sm:$0xff]
    %v176 = vld [vmem:[#allocation5 + $0x58] sm:$0xff]
    %v177 = vld [vmem:[#allocation5 + $0x60] sm:$0xff]
    %v178 = vld [vmem:[#allocation5 + $0x68] sm:$0xff]
    %v179 = vld [vmem:[#allocation5 + $0x70] sm:$0xff]
    %v180 = vld [vmem:[#allocation5 + $0x78] sm:$0xff]
    %181 = vmatprep.subr.mxu0 0.0
    %182 = vmatpush1.msra.mxu0 %v165
    %183 = vmatprep.subr.mxu0 0.0
    %184 = vmatpush1.msra.mxu0 %v166
    %185 = vmatprep.subr.mxu0 0.0
    %186 = vmatpush1.msra.mxu0 %v167
    %187 = vmatprep.subr.mxu0 0.0
    %188 = vmatpush1.msra.mxu0 %v168
    %189 = vmatprep.subr.mxu0 0.0
    %190 = vmatpush1.msra.mxu0 %v169
    %191 = vmatprep.subr.mxu0 0.0
    %192 = vmatpush1.msra.mxu0 %v170
    %193 = vmatprep.subr.mxu0 0.0
    %194 = vmatpush1.msra.mxu0 %v171
    %195 = vmatprep.subr.mxu0 0.0
    %196 = vmatpush1.msra.mxu0 %v172
    %197 = vmatprep.subr.mxu0 0.0
    %198 = vmatpush1.msra.mxu0 %v173
    %199 = vmatprep.subr.mxu0 0.0
    %200 = vmatpush1.msra.mxu0 %v174
    %201 = vmatprep.subr.mxu0 0.0
    %202 = vmatpush1.msra.mxu0 %v175
    %203 = vmatprep.subr.mxu0 0.0
    %204 = vmatpush1.msra.mxu0 %v176
    %205 = vmatprep.subr.mxu0 0.0
    %206 = vmatpush1.msra.mxu0 %v177
    %207 = vmatprep.subr.mxu0 0.0
    %208 = vmatpush1.msra.mxu0 %v178
    %209 = vmatprep.subr.mxu0 0.0
    %210 = vmatpush1.msra.mxu0 %v179
    %211 = vmatprep.subr.mxu0 0.0
    %212 = vmatpush1.msra.mxu0 %v180
    %213 = vmatprep.subr.mxu0 0.0
    %214 = vmatpush1.msra.mxu0 0.0
    %215 = vmatprep.subr.mxu0 0.0
    %216 = vmatpush1.msra.mxu0 0.0
    %217 = vmatprep.subr.mxu0 0.0
    %218 = vmatpush1.msra.mxu0 0.0
    %219 = vmatprep.subr.mxu0 0.0
    %220 = vmatpush1.msra.mxu0 0.0
    %221 = vmatprep.subr.mxu0 0.0
    %222 = vmatpush1.msra.mxu0 0.0
    %223 = vmatprep.subr.mxu0 0.0
    %224 = vmatpush1.msra.mxu0 0.0
    %225 = vmatprep.subr.mxu0 0.0
    %226 = vmatpush1.msra.mxu0 0.0
    %227 = vmatprep.subr.mxu0 0.0
    %228 = vmatpush1.msra.mxu0 0.0
    %229 = vmatprep.subr.mxu0 0.0
    %230 = vmatpush1.msra.mxu0 0.0
    %231 = vmatprep.subr.mxu0 0.0
    %232 = vmatpush1.msra.mxu0 0.0
    %233 = vmatprep.subr.mxu0 0.0
    %234 = vmatpush1.msra.mxu0 0.0
    %235 = vmatprep.subr.mxu0 0.0
    %236 = vmatpush1.msra.mxu0 0.0
    %237 = vmatprep.subr.mxu0 0.0
    %238 = vmatpush1.msra.mxu0 0.0
    %239 = vmatprep.subr.mxu0 0.0
    %240 = vmatpush1.msra.mxu0 0.0
    %241 = vmatprep.subr.mxu0 0.0
    %242 = vmatpush1.msra.mxu0 0.0
    %243 = vmatprep.subr.mxu0 0.0
    %244 = vmatpush1.msra.mxu0 0.0
    %245 = vmatprep.mubr.f32.mxu0 0.0
    %246 = vmatmul.mubr.f32.gmra.mrb[0].mxu0 %v161
    %v247 = vpop.f32.mrb[0].mxu0
    %v248 = vadd.f32 0.0, %v247
    %v249 = vpop.f32.mrb[0].mxu0
    %250 = vmatprep.mubr.f32.mxu0 0.0
    %251 = vmatmul.mubr.f32.gmra.mrb[0].mxu0 %v162
    %v252 = vpop.f32.mrb[0].mxu0
    %v253 = vadd.f32 0.0, %v252
    %v254 = vpop.f32.mrb[0].mxu0
    %255 = vdwg.mxu0
    %v256 = vadd.f32 %v163, %v248
    %v257 = vadd.f32 %v164, %v253
    %258 = vst [vmem:[#allocation2] sm:$0xff] %v256
    %259 = vst [vmem:[#allocation2 + $0x8] sm:$0xff] %v257
    // Predicated region
    $region34: #{feed_forward.1} parent=1 // pred_check
      %p260 = pneg %p48
    $region35: #{feed_forward.1} parent=1 // pred_check_branch
      %262 = sbr.rel (%p260) target = $region37
    $region36: #{feed_forward.1} parent=1 // pred_region
      %v263 = vld [vmem:[#allocation2] sm:$0xff]
      %v264 = vld [vmem:[#allocation2 + $0x8] sm:$0xff]
      %265 = vst [vmem:[%s5] sm:$0xff] %v263
      %266 = vst [vmem:[%s5 + $0x8] sm:$0xff] %v264
    $region37: #{feed_forward.1} parent=1 // pred_fallthru
      _
    // Predicated region
    $region38: #{feed_forward.1} parent=1 // pred_check
      _
    $region39: #{feed_forward.1} parent=1 // pred_check_branch
      %268 = sbr.rel (0) target = $region41
    $region40: #{feed_forward.1} parent=1 // pred_region
      _
    $region41: #{feed_forward.1} parent=1 // pred_fallthru
      _
    // Predicated region
    $region42: #{feed_forward.1} parent=1 // pred_check
      _
    $region43: #{feed_forward.1} parent=1 // pred_check_branch
      %270 = sbr.rel (0) target = $region45
    $region44: #{feed_forward.1} parent=1 // pred_region
      _
    $region45: #{feed_forward.1} parent=1 // pred_fallthru
      _
    %271 = vsyncpa [#allocation4], 1
    %272 = vsyncpa [#allocation6], 1

</llo_original>
